<compile_context>
chip_gen: v7x
topology: tpu7x:2x2x1
jax: 0.10.0
libtpu: 0.0.40
codegen_flags: <defaults>
</compile_context>

<pallas_src>
import jax
import jax.numpy as jnp
from jax.experimental import pallas as pl
from jax.experimental.pallas import tpu as pltpu


# ---------------------------------------------------------------------------
# Stage 1: layer-0 input projection (no recurrent dependency -> hoisted).
#   xg0[t] = embeds[t] @ W_ih0^T + (b_ih0 + b_hh0)        (stored bf16)
# ---------------------------------------------------------------------------
def input_proj_kernel(x_ref, w_ref, b_ref, out_ref):
    bt, bb, e = x_ref.shape
    x2d = x_ref[...].reshape(bt * bb, e)                      # (bt*B, E) bf16
    y = jnp.dot(x2d, w_ref[...], preferred_element_type=jnp.float32)
    y = y + b_ref[...]                                        # combined layer-0 bias (f32)
    out_ref[...] = y.reshape(bt, bb, -1).astype(out_ref.dtype)


# ---------------------------------------------------------------------------
# Stage 2: 2-layer LSTM recurrence + fc + sigmoid head.
# grid = (batch_tiles "parallel", time_blocks "arbitrary"); h/c live in VMEM
# scratch, init at t==0, finalize (hn/cn/pred) at the last time block.
# ---------------------------------------------------------------------------
def lstm_recurrence_kernel(xg0_ref,          # (block_t, Bt, 4H) bf16  precomputed layer-0 input proj
                           whh0_ref,         # (H, 4H)  bf16
                           wih1_ref,         # (H, 4H)  bf16
                           whh1_ref,         # (H, 4H)  bf16
                           b1_ref,           # (1, 4H)  f32   b_ih1 + b_hh1
                           fcw_ref,          # (H, 1)   f32
                           fcb_ref,          # (1, 1)   f32
                           h0_ref, c0_ref,   # (2, Bt, H) f32
                           pred_ref,         # (Bt, 1)  f32
                           hn_ref, cn_ref,   # (2, Bt, H) f32
                           h1_sc, c1_sc, h2_sc, c2_sc):   # (Bt, H) f32 scratch
    block_t = xg0_ref.shape[0]
    b_blk = xg0_ref.shape[1]
    H = whh0_ref.shape[0]
    t_idx = pl.program_id(1)

    @pl.when(t_idx == 0)
    def _init():
        h1_sc[...] = h0_ref[0]
        c1_sc[...] = c0_ref[0]
        h2_sc[...] = h0_ref[1]
        c2_sc[...] = c0_ref[1]

    # Hoist weight loads and the bias broadcast out of the unrolled time loop.
    whh0 = whh0_ref[...]
    wih1 = wih1_ref[...]
    whh1 = whh1_ref[...]
    b1 = jnp.broadcast_to(b1_ref[...], (b_blk, 4 * H))

    def gates_to_hc(g, c):
        # PyTorch gate order: i, f, g, o (lane-aligned slices when H % 128 == 0)
        i = jax.nn.sigmoid(g[:, 0 * H:1 * H])
        f = jax.nn.sigmoid(g[:, 1 * H:2 * H])
        gg = jnp.tanh(g[:, 2 * H:3 * H])
        o = jax.nn.sigmoid(g[:, 3 * H:4 * H])
        c_new = f * c + i * gg
        h_new = o * jnp.tanh(c_new)
        return h_new, c_new

    h1 = h1_sc[...]
    c1 = c1_sc[...]
    h2 = h2_sc[...]
    c2 = c2_sc[...]

    for i in range(block_t):   # static -> fully unrolled for LLO scheduler visibility
        # layer 1 recurrent half does not depend on this step's h1 -> issue early.
        g1_hh = jnp.dot(h2.astype(jnp.bfloat16), whh1,
                        preferred_element_type=jnp.float32)
        # layer 0: input projection precomputed, only the recurrent matmul on the critical path
        g0 = xg0_ref[i].astype(jnp.float32) + jnp.dot(
            h1.astype(jnp.bfloat16), whh0, preferred_element_type=jnp.float32)
        h1, c1 = gates_to_hc(g0, c1)
        # layer 1: input half depends on fresh h1
        g1 = g1_hh + jnp.dot(h1.astype(jnp.bfloat16), wih1,
                             preferred_element_type=jnp.float32) + b1
        h2, c2 = gates_to_hc(g1, c2)

    h1_sc[...] = h1
    c1_sc[...] = c1
    h2_sc[...] = h2
    c2_sc[...] = c2

    @pl.when(t_idx == pl.num_programs(1) - 1)
    def _finalize():
        hn_ref[0] = h1
        hn_ref[1] = h2
        cn_ref[0] = c1
        cn_ref[1] = c2
        # TODO(synk): nn.Dropout(p=0.2) on lstmOut is identity at inference; training-mode masking not implemented.
        logits = jnp.dot(h2, fcw_ref[...], preferred_element_type=jnp.float32) + fcb_ref[...]
        pred_ref[...] = jax.nn.sigmoid(logits)


def _largest_divisor(n, candidates):
    for c in candidates:
        if n % c == 0:
            return c
    return 1


def sentiment_rnn_forward(x_tokens, hidden, params):
    """x_tokens: (B, T) int32; hidden: (h0, c0) each (2, B, H)."""
    emb_table = params["embedding"]
    B, T = x_tokens.shape
    H = params["w_hh0"].shape[1]          # w_hh0 is (4H, H)
    E = emb_table.shape[1]

    # Embedding gather produced time-major directly (no (B,T,E)->(T,B,E) transpose copy);
    # bf16 table halves gather + streamed-x bandwidth. Keep states/biases in f32.
    embeds_tm = jnp.take(emb_table.astype(jnp.bfloat16), x_tokens.T, axis=0)   # (T, B, E)

    # Pre-transposed weights (row-major matmuls inside the kernels).
    wih0_t = params["w_ih0"].T.astype(jnp.bfloat16)                            # (E, 4H)
    b0 = (params["b_ih0"] + params["b_hh0"])[None, :].astype(jnp.float32)      # (1, 4H)
    whh0_t = params["w_hh0"].T.astype(jnp.bfloat16)                            # (H, 4H)
    wih1_t = params["w_ih1"].T.astype(jnp.bfloat16)                            # (H, 4H)
    whh1_t = params["w_hh1"].T.astype(jnp.bfloat16)                            # (H, 4H)
    b1 = (params["b_ih1"] + params["b_hh1"])[None, :].astype(jnp.float32)      # (1, 4H)
    fcw_t = params["fc_w"].T.astype(jnp.float32)                               # (H, 1)
    fcb = params["fc_b"][None, :].astype(jnp.float32)                          # (1, 1)

    h0, c0 = hidden
    h0 = h0.astype(jnp.float32)
    c0 = c0.astype(jnp.float32)

    block_t = _largest_divisor(T, (8, 4, 2))
    num_t_blocks = T // block_t
    # Batch tiling: 2 tiles for larger batches so the "parallel" axis can use both
    # v7x TensorCores; single tile for small demo batches.
    if B >= 16 and B % 16 == 0:
        b_tile = B // 2
    else:
        b_tile = B
    num_b_tiles = B // b_tile

    # ---- Stage 1: hoisted layer-0 input projection (bf16 intermediate) ----
    xg0 = pl.pallas_call(
        input_proj_kernel,
        out_shape=jax.ShapeDtypeStruct((T, B, 4 * H), jnp.bfloat16),
        grid=(num_t_blocks,),
        in_specs=[
            pl.BlockSpec((block_t, B, E), lambda t: (t, 0, 0)),
            pl.BlockSpec((E, 4 * H), lambda t: (0, 0)),
            pl.BlockSpec((1, 4 * H), lambda t: (0, 0)),
        ],
        out_specs=pl.BlockSpec((block_t, B, 4 * H), lambda t: (t, 0, 0)),
        compiler_params=pltpu.CompilerParams(dimension_semantics=("parallel",)),
    )(embeds_tm, wih0_t, b0)

    # ---- Stage 2: streamed recurrence (constant VMEM footprint in T) ----
    pred, hn, cn = pl.pallas_call(
        lstm_recurrence_kernel,
        out_shape=(
            jax.ShapeDtypeStruct((B, 1), jnp.float32),
            jax.ShapeDtypeStruct((2, B, H), jnp.float32),
            jax.ShapeDtypeStruct((2, B, H), jnp.float32),
        ),
        grid=(num_b_tiles, num_t_blocks),
        in_specs=[
            pl.BlockSpec((block_t, b_tile, 4 * H), lambda b, t: (t, b, 0)),   # xg0 (streamed)
            pl.BlockSpec((H, 4 * H), lambda b, t: (0, 0)),                    # whh0 (resident)
            pl.BlockSpec((H, 4 * H), lambda b, t: (0, 0)),                    # wih1
            pl.BlockSpec((H, 4 * H), lambda b, t: (0, 0)),                    # whh1
            pl.BlockSpec((1, 4 * H), lambda b, t: (0, 0)),                    # b1
            pl.BlockSpec((H, 1), lambda b, t: (0, 0)),                        # fc weight
            pl.BlockSpec((1, 1), lambda b, t: (0, 0)),                        # fc bias
            pl.BlockSpec((2, b_tile, H), lambda b, t: (0, b, 0)),             # h0
            pl.BlockSpec((2, b_tile, H), lambda b, t: (0, b, 0)),             # c0
        ],
        out_specs=(
            pl.BlockSpec((b_tile, 1), lambda b, t: (b, 0)),
            pl.BlockSpec((2, b_tile, H), lambda b, t: (0, b, 0)),
            pl.BlockSpec((2, b_tile, H), lambda b, t: (0, b, 0)),
        ),
        scratch_shapes=[
            pltpu.VMEM((b_tile, H), jnp.float32),
            pltpu.VMEM((b_tile, H), jnp.float32),
            pltpu.VMEM((b_tile, H), jnp.float32),
            pltpu.VMEM((b_tile, H), jnp.float32),
        ],
        compiler_params=pltpu.CompilerParams(
            dimension_semantics=("parallel", "arbitrary")),
    )(xg0, whh0_t, wih1_t, whh1_t, b1, fcw_t, fcb, h0, c0)

    sigmoid_out = pred[:, 0]          # matches sigmoidOut.view(B, -1)[:, -1]
    return sigmoid_out, (hn, cn)


# ---------------------------------------------------------------------------
# Pure-JAX reference (f32) for a correctness check.
# ---------------------------------------------------------------------------
def sentiment_rnn_reference(x_tokens, hidden, params):
    emb = params["embedding"][x_tokens]                       # (B, T, E) f32
    xs = jnp.transpose(emb, (1, 0, 2))                        # (T, B, E)
    h0, c0 = hidden
    H = params["w_hh0"].shape[1]

    def lstm_layer(xs, h, c, wih, whh, bih, bhh):
        def step(carry, x_t):
            h, c = carry
            g = x_t @ wih.T + h @ whh.T + bih + bhh
            i = jax.nn.sigmoid(g[:, 0 * H:1 * H])
            f = jax.nn.sigmoid(g[:, 1 * H:2 * H])
            gg = jnp.tanh(g[:, 2 * H:3 * H])
            o = jax.nn.sigmoid(g[:, 3 * H:4 * H])
            c = f * c + i * gg
            h = o * jnp.tanh(c)
            return (h, c), h
        (h, c), ys = jax.lax.scan(step, (h, c), xs)
        return ys, h, c

    ys0, h1, c1 = lstm_layer(xs, h0[0], c0[0], params["w_ih0"], params["w_hh0"],
                             params["b_ih0"], params["b_hh0"])
    ys1, h2, c2 = lstm_layer(ys0, h0[1], c0[1], params["w_ih1"], params["w_hh1"],
                             params["b_ih1"], params["b_hh1"])
    logits = ys1[-1] @ params["fc_w"].T + params["fc_b"]
    sig = jax.nn.sigmoid(logits)[:, -1]
    return sig, (jnp.stack([h1, h2]), jnp.stack([c1, c2]))


def init_params(key, vocab_size, embedding_dim, hidden_dim, output_size):
    keys = jax.random.split(key, 11)
    s = 0.1
    return {
        "embedding": jax.random.normal(keys[0], (vocab_size, embedding_dim), jnp.float32) * s,
        # layer 0: input = embedding_dim
        "w_ih0": jax.random.normal(keys[1], (4 * hidden_dim, embedding_dim), jnp.float32) * s,
        "w_hh0": jax.random.normal(keys[2], (4 * hidden_dim, hidden_dim), jnp.float32) * s,
        "b_ih0": jax.random.normal(keys[3], (4 * hidden_dim,), jnp.float32) * s,
        "b_hh0": jax.random.normal(keys[4], (4 * hidden_dim,), jnp.float32) * s,
        # layer 1: input = hidden_dim
        "w_ih1": jax.random.normal(keys[5], (4 * hidden_dim, hidden_dim), jnp.float32) * s,
        "w_hh1": jax.random.normal(keys[6], (4 * hidden_dim, hidden_dim), jnp.float32) * s,
        "b_ih1": jax.random.normal(keys[7], (4 * hidden_dim,), jnp.float32) * s,
        "b_hh1": jax.random.normal(keys[8], (4 * hidden_dim,), jnp.float32) * s,
        # fc head
        "fc_w": jax.random.normal(keys[9], (output_size, hidden_dim), jnp.float32) * s,
        "fc_b": jax.random.normal(keys[10], (output_size,), jnp.float32) * s,
    }


if __name__ == "__main__":
    # Small but TPU-shaped: batch multiple of 8 (f32 sublanes), hidden multiple of 128
    # (lane-aligned gate slices, full 128-wide MXU columns).
    batch = 8
    seq = 16
    vocab_size = 100
    embedding_dim = 128
    hidden_dim = 128
    n_layers = 2
    output_size = 1

    key = jax.random.PRNGKey(0)
    k_param, k_tok = jax.random.split(key)

    params = init_params(k_param, vocab_size, embedding_dim, hidden_dim, output_size)
    x = jax.random.randint(k_tok, (batch, seq), 0, vocab_size, dtype=jnp.int32)

    # init_hidden: zeros of shape (nLayers, batch, hiddenDim)
    h0 = jnp.zeros((n_layers, batch, hidden_dim), jnp.float32)
    c0 = jnp.zeros((n_layers, batch, hidden_dim), jnp.float32)

    sigmoid_out, (hn, cn) = sentiment_rnn_forward(x, (h0, c0), params)
    jax.block_until_ready((sigmoid_out, hn, cn))

    assert sigmoid_out.shape == (batch,)
    assert hn.shape == (n_layers, batch, hidden_dim)
    assert cn.shape == (n_layers, batch, hidden_dim)
    assert bool(jnp.all(jnp.isfinite(sigmoid_out)))

    # Correctness vs pure-JAX f32 reference (loose tolerance: bf16 MXU inputs).
    ref_sig, (ref_hn, ref_cn) = sentiment_rnn_reference(x, (h0, c0), params)
    assert bool(jnp.allclose(sigmoid_out, ref_sig, atol=5e-2)), "sigmoid_out mismatch"
    assert bool(jnp.allclose(hn, ref_hn, atol=5e-2)), "hn mismatch"
    assert bool(jnp.allclose(cn, ref_cn, atol=5e-2)), "cn mismatch"

    print("KERNEL_OK")
</pallas_src>

<mosaic_0001>
module attributes {stable_mosaic.version = 11 : i64} {
  func.func @input_proj_kernel(%arg0: i32, %arg1: memref<8x8x128xbf16, #tpu.memory_space<vmem>>, %arg2: memref<128x512xbf16, #tpu.memory_space<vmem>>, %arg3: memref<1x512xf32, #tpu.memory_space<vmem>>, %arg4: memref<8x8x512xbf16, #tpu.memory_space<vmem>>) attributes {dimension_semantics = [#tpu.dimension_semantics<parallel>], iteration_bounds = array<i64: 2>, scalar_prefetch = 0 : i64, scratch_operands = 0 : i64, tpu.core_type = #tpu.core_type<tc>, window_params = [{transform_indices = @transform_0, window_bounds = array<i64: 8, 8, 128>}, {pipeline_mode = #tpu.pipeline_mode<synchronous>, transform_indices = @transform_1, window_bounds = array<i64: 128, 512>}, {pipeline_mode = #tpu.pipeline_mode<synchronous>, transform_indices = @transform_2, window_bounds = array<i64: 1, 512>}, {transform_indices = @transform_3, window_bounds = array<i64: 8, 8, 512>}]} {
    %c0 = arith.constant 0 : index
    %c0_0 = arith.constant 0 : index
    %c0_1 = arith.constant 0 : index
    %0 = vector.load %arg1[%c0, %c0_0, %c0_1] : memref<8x8x128xbf16, #tpu.memory_space<vmem>>, vector<8x8x128xbf16>
    %1 = vector.shape_cast %0 : vector<8x8x128xbf16> to vector<64x128xbf16>
    %c0_2 = arith.constant 0 : index
    %c0_3 = arith.constant 0 : index
    %2 = vector.load %arg2[%c0_2, %c0_3] : memref<128x512xbf16, #tpu.memory_space<vmem>>, vector<128x512xbf16>
    %cst = arith.constant dense<0.000000e+00> : vector<64x512xf32>
    %3 = tpu.matmul %1, %2, %cst {dimension_numbers = #tpu.dot_dimension_numbers<[1], [0], [0], [1], [0, 0, 1, 1], [], []>} : vector<64x128xbf16>, vector<128x512xbf16>, vector<64x512xf32> -> vector<64x512xf32>
    %c0_4 = arith.constant 0 : index
    %c0_5 = arith.constant 0 : index
    %4 = vector.load %arg3[%c0_4, %c0_5] : memref<1x512xf32, #tpu.memory_space<vmem>>, vector<1x512xf32>
    %5 = vector.broadcast %4 : vector<1x512xf32> to vector<64x512xf32>
    %6 = arith.addf %3, %5 : vector<64x512xf32>
    %7 = vector.shape_cast %6 : vector<64x512xf32> to vector<8x8x512xf32>
    %8 = arith.truncf %7 : vector<8x8x512xf32> to vector<8x8x512xbf16>
    %c0_6 = arith.constant 0 : index
    %c0_7 = arith.constant 0 : index
    %c0_8 = arith.constant 0 : index
    %9 = vector.load %arg4[%c0_6, %c0_7, %c0_8] : memref<8x8x512xbf16, #tpu.memory_space<vmem>>, vector<8x8x512xbf16>
    tpu.vector_store %arg4[%c0_6, %c0_7, %c0_8], %8 {strides = array<i32>} : memref<8x8x512xbf16, #tpu.memory_space<vmem>>, vector<8x8x512xbf16>,
    return
  }
  func.func @transform_0(%arg0: i32) -> (i32, i32, i32) {
    %c0_i32 = arith.constant 0 : i32
    %c0_i32_0 = arith.constant 0 : i32
    %c0_i32_1 = arith.constant 0 : i32
    return %arg0, %c0_i32, %c0_i32_0 : i32, i32, i32
  }
  func.func @transform_1(%arg0: i32) -> (i32, i32) {
    %c0_i32 = arith.constant 0 : i32
    %c0_i32_0 = arith.constant 0 : i32
    %c0_i32_1 = arith.constant 0 : i32
    return %c0_i32, %c0_i32_0 : i32, i32
  }
  func.func @transform_2(%arg0: i32) -> (i32, i32) {
    %c0_i32 = arith.constant 0 : i32
    %c0_i32_0 = arith.constant 0 : i32
    %c0_i32_1 = arith.constant 0 : i32
    return %c0_i32, %c0_i32_0 : i32, i32
  }
  func.func @transform_3(%arg0: i32) -> (i32, i32, i32) {
    %c0_i32 = arith.constant 0 : i32
    %c0_i32_0 = arith.constant 0 : i32
    %c0_i32_1 = arith.constant 0 : i32
    return %arg0, %c0_i32, %c0_i32_0 : i32, i32, i32
  }
}

</mosaic_0001>

<llo_original>
// kernel: tpu_custom_call.1
$region0: #{tpu_custom_call.1}
  #allocation0 [shape = 'u32[]', space=smem, size = 0x4, offset = 0x4, fixed_abs, tag = 'smem constant byte address 0x4 - core index']
  #allocation1 [shape = 'u32[144,128]{1,0:T(1,128)}', space=vmem, size = 0x12000, scoped, tag = 'internal scratch']
  %s0 = inlined_call_operand.hbm [shape: bf16[16,8,128], index: 0, kind: input, shape index: {}]
  %s1 = inlined_call_operand.hbm [shape: bf16[128,512], index: 1, kind: input, shape index: {}]
  %s2 = inlined_call_operand.vmem [shape: f32[1,512], index: 2, kind: input, shape index: {}]
  %s3 = inlined_call_operand.hbm [shape: bf16[16,8,512], index: 3, kind: output, shape index: {}]
  %s4 = sld [smem:[#allocation0]]
  $region53: #{tpu_custom_call.1} parent=0
    _
  %s6 = ssub.s32 1, %s4
  %s7 = scalar_select 0, %s6, %s4
  $region1: #{tpu_custom_call.1} parent=0
    #allocation2 [shape = 'u8[32768]{0}', space=vmem, size = 0x8000, scoped, tag = 'input window, operand 0']
    #allocation3 [shape = 's32[2]{0}', space=sflag, size = 0x8, scoped, tag = 'scoped memory for tpu_custom_call.1']
    #allocation4 [shape = 's32[2]{0}', space=sflag, size = 0x8, scoped, tag = 'scoped memory for tpu_custom_call.1']
    #allocation5 [shape = 'u8[131072]{0}', space=vmem, size = 0x20000, scoped, tag = 'input window, operand 1, single buffered']
    #allocation6 [shape = 's32[1]{0}', space=sflag, size = 0x4, scoped, tag = 'scoped memory for tpu_custom_call.1']
    #allocation7 [shape = 'u8[131072]{0}', space=vmem, size = 0x20000, scoped, tag = 'output window, operand 0']
    %8 = vsyncpa [#allocation3], 0
    %s9 = scalar_lea.sflag [#allocation3], 1
    %10 = vsyncpa %s9, 0
    %11 = vsyncpa [#allocation6], 0
    %12 = vsyncpa [#allocation4], 0
    %s13 = scalar_lea.sflag [#allocation4], 1
    %14 = vsyncpa %s13, 0
    loop: start=0, step=1, limit=4
    $region2: #{tpu_custom_call.1} parent=1 // loop_pre_header
      _
    $region3: #{tpu_custom_call.1} parent=1 // loop_header
      %s16 = sphi 0, %s20
      %p17 = scmp.ge.s32.totalorder %s16, 4
      %s26 = sphi 0, %s28
      %s29 = sphi 0, %s26
      %s30 = sphi 0, %s29
      %s46 = sphi 0, %s30
      %s50 = sphi 0, %s50
      %s52 = sphi 0, %s50
      %s53 = sphi 0, %s52
      %s67 = sphi 0, %s53
      %s71 = sphi 0, %s71
      %s73 = sphi 0, %s71
      %s74 = sphi 0, %s73
      %s88 = sphi 0, %s74
      %s94 = sphi 0, %s96
      %s97 = sphi 0, %s94
      %s98 = sphi 0, %s97
      %s114 = sphi 0, %s98
    $region4: #{tpu_custom_call.1} parent=1 // loop_header_branch
      %19 = sbr.rel (%p17) target = $region8
    $region5: #{tpu_custom_call.1} parent=1 // loop_body
      %s21 = ssub.s32 %s16, 1
      %s22 = ssub.s32 %s16, 2
      %s23 = sadd.s32 %s16, 1
      %s24 = ssub.s32 %s16, %s23
      %p25 = scmp.eq.s32.totalorder %s24, 0
      %s27 = sadd.s32 %s26, 1
      %s28 = scalar_select %p25, %s26, %s27
      %p31 = pneg %p25
      %p32 = scmp.eq.s32.totalorder %s16, 1
      %p33 = por %p31, %p32
      %p34 = scmp.ne.s32.totalorder %s26, %s29
      %p35 = scmp.eq.s32.totalorder %s16, 0
      %p36 = por %p34, %p35
      %p37 = scmp.ne.s32.totalorder %s26, %s29
      %p38 = scmp.eq.s32.totalorder %s21, 1
      %p39 = por %p37, %p38
      %p40 = scmp.ne.s32.totalorder %s29, %s30
      %p41 = scmp.eq.s32.totalorder %s21, 0
      %p42 = por %p40, %p41
      %p43 = scmp.ne.s32.totalorder %s29, %s30
      %p44 = scmp.eq.s32.totalorder %s22, 1
      %p45 = por %p43, %p44
      %p47 = scmp.ne.s32.totalorder %s30, %s46
      %p48 = scmp.eq.s32.totalorder %s22, 0
      %p49 = por %p47, %p48
      %s51 = sadd.s32 %s50, 1
      %p54 = scmp.eq.s32.totalorder %s16, 1
      %p55 = scmp.ne.s32.totalorder %s50, %s52
      %p56 = scmp.eq.s32.totalorder %s16, 0
      %p57 = por %p55, %p56
      %p58 = scmp.ne.s32.totalorder %s50, %s52
      %p59 = scmp.eq.s32.totalorder %s21, 1
      %p60 = por %p58, %p59
      %p61 = scmp.ne.s32.totalorder %s52, %s53
      %p62 = scmp.eq.s32.totalorder %s21, 0
      %p63 = por %p61, %p62
      %p64 = scmp.ne.s32.totalorder %s52, %s53
      %p65 = scmp.eq.s32.totalorder %s22, 1
      %p66 = por %p64, %p65
      %p68 = scmp.ne.s32.totalorder %s53, %s67
      %p69 = scmp.eq.s32.totalorder %s22, 0
      %p70 = por %p68, %p69
      %s72 = sadd.s32 %s71, 1
      %p75 = scmp.eq.s32.totalorder %s16, 1
      %p76 = scmp.ne.s32.totalorder %s71, %s73
      %p77 = scmp.eq.s32.totalorder %s16, 0
      %p78 = por %p76, %p77
      %p79 = scmp.ne.s32.totalorder %s71, %s73
      %p80 = scmp.eq.s32.totalorder %s21, 1
      %p81 = por %p79, %p80
      %p82 = scmp.ne.s32.totalorder %s73, %s74
      %p83 = scmp.eq.s32.totalorder %s21, 0
      %p84 = por %p82, %p83
      %p85 = scmp.ne.s32.totalorder %s73, %s74
      %p86 = scmp.eq.s32.totalorder %s22, 1
      %p87 = por %p85, %p86
      %p89 = scmp.ne.s32.totalorder %s74, %s88
      %p90 = scmp.eq.s32.totalorder %s22, 0
      %p91 = por %p89, %p90
      %s92 = ssub.s32 %s16, %s23
      %p93 = scmp.eq.s32.totalorder %s92, 0
      %s95 = sadd.s32 %s94, 1
      %s96 = scalar_select %p93, %s94, %s95
      %p99 = pneg %p93
      %p100 = scmp.eq.s32.totalorder %s16, 1
      %p101 = por %p99, %p100
      %p102 = scmp.ne.s32.totalorder %s94, %s97
      %p103 = scmp.eq.s32.totalorder %s16, 0
      %p104 = por %p102, %p103
      %p105 = scmp.ne.s32.totalorder %s94, %s97
      %p106 = scmp.eq.s32.totalorder %s21, 1
      %p107 = por %p105, %p106
      %p108 = scmp.ne.s32.totalorder %s97, %s98
      %p109 = scmp.eq.s32.totalorder %s21, 0
      %p110 = por %p108, %p109
      %p111 = scmp.ne.s32.totalorder %s97, %s98
      %p112 = scmp.eq.s32.totalorder %s22, 1
      %p113 = por %p111, %p112
      %p115 = scmp.ne.s32.totalorder %s98, %s114
      %p116 = scmp.eq.s32.totalorder %s22, 0
      %p117 = por %p115, %p116
      %p118 = scmp.le.s32.totalorder 1, %s16
      %p119 = scmp.lt.s32.totalorder %s16, 3
      %p120 = pnand %p118, %p119
      %p121 = pneg %p120
      // Predicated region
      $region9: #{tpu_custom_call.1} parent=5 // pred_check
        _
      $region10: #{tpu_custom_call.1} parent=5 // pred_check_branch
        %123 = sbr.rel (%p120) target = $region12
      $region11: #{tpu_custom_call.1} parent=5 // pred_region
        %s124 = ssub.s32 %s16, 1
        // Predicated region
        $region13: #{tpu_custom_call.1} parent=11 // pred_check
          %p125 = pneg %p63
        $region14: #{tpu_custom_call.1} parent=11 // pred_check_branch
          %127 = sbr.rel (%p125) target = $region16
        $region15: #{tpu_custom_call.1} parent=11 // pred_region
          %s129 = ssub.s32 4096, 4096
          %130 = vsyncadd [#allocation6], %s129
          %s131 = sshll.u32 [#allocation5], 4
          %s132 = int_to_ptr.vmem [resolvable:$true] %s131
          %137 = dma.hbm_to_vmem [thread:$0]  %s1, 4096, %s132, [#allocation6], 256, 256, 16
        $region16: #{tpu_custom_call.1} parent=11 // pred_fallthru
          _
        // Predicated region
        $region17: #{tpu_custom_call.1} parent=11 // pred_check
          %p138 = pneg %p84
        $region18: #{tpu_custom_call.1} parent=11 // pred_check_branch
          %140 = sbr.rel (%p138) target = $region20
        $region19: #{tpu_custom_call.1} parent=11 // pred_region
          _
        $region20: #{tpu_custom_call.1} parent=11 // pred_fallthru
          _
      $region12: #{tpu_custom_call.1} parent=5 // pred_fallthru
        _
      %p141 = scmp.lt.s32.totalorder %s16, 2
      // Predicated region
      $region21: #{tpu_custom_call.1} parent=5 // pred_check
        %p142 = pneg %p141
      $region22: #{tpu_custom_call.1} parent=5 // pred_check_branch
        %144 = sbr.rel (%p142) target = $region24
      $region23: #{tpu_custom_call.1} parent=5 // pred_region
        // Predicated region
        $region25: #{tpu_custom_call.1} parent=23 // pred_check
          %p145 = pneg %p36
        $region26: #{tpu_custom_call.1} parent=23 // pred_check_branch
          %147 = sbr.rel (%p145) target = $region28
        $region27: #{tpu_custom_call.1} parent=23 // pred_region
          %s148 = sand.u32 %s26, 1
          %s149 = scalar_lea.sflag [#allocation3], %s148
          %s150 = sand.u32 %s26, 1
          %s151 = smul.addr %s150, 32
          %s152 = scalar_lea.vmem [#allocation2], %s151
          %s153 = smul.u32 8, %s16
          %s155 = ssub.s32 512, 512
          %156 = vsyncadd %s149, %s155
          %s157 = smul.addr %s153, 64
          %s158 = scalar_lea.hbm %s0, %s157
          %s159 = sshll.u32 %s152, 4
          %s160 = int_to_ptr.vmem [resolvable:$true] %s159
          %165 = dma.hbm_to_vmem [thread:$0]  %s158, 512, %s160, %s149, 64, 64, 4
        $region28: #{tpu_custom_call.1} parent=23 // pred_fallthru
          _
      $region24: #{tpu_custom_call.1} parent=5 // pred_fallthru
        _
      %p166 = scmp.le.s32.totalorder 1, %s16
      %p167 = scmp.lt.s32.totalorder %s16, 3
      %p168 = pnand %p166, %p167
      %p169 = pneg %p168
      // Predicated region
      $region29: #{tpu_custom_call.1} parent=5 // pred_check
        _
      $region30: #{tpu_custom_call.1} parent=5 // pred_check_branch
        %171 = sbr.rel (%p168) target = $region32
      $region31: #{tpu_custom_call.1} parent=5 // pred_region
        %s172 = ssub.s32 %s16, 1
        %s173 = sand.u32 %s29, 1
        %s174 = scalar_lea.sflag [#allocation3], %s173
        %s175 = sand.u32 %s29, 1
        %s176 = smul.addr %s175, 32
        %s177 = scalar_lea.vmem [#allocation2], %s176
        // Predicated region
        $region33: #{tpu_custom_call.1} parent=31 // pred_check
          %p178 = pneg %p42
        $region34: #{tpu_custom_call.1} parent=31 // pred_check_branch
          %180 = sbr.rel (%p178) target = $region36
        $region35: #{tpu_custom_call.1} parent=31 // pred_region
          %181 = dma.done %s174, 512
        $region36: #{tpu_custom_call.1} parent=31 // pred_fallthru
          _
        // Predicated region
        $region37: #{tpu_custom_call.1} parent=31 // pred_check
          %p182 = pneg %p63
        $region38: #{tpu_custom_call.1} parent=31 // pred_check_branch
          %184 = sbr.rel (%p182) target = $region40
        $region39: #{tpu_custom_call.1} parent=31 // pred_region
          %185 = dma.done [#allocation6], 4096
        $region40: #{tpu_custom_call.1} parent=31 // pred_fallthru
          _
        %s186 = sand.u32 %s29, 1
        %s187 = scalar_lea.sflag [#allocation3], %s186
        %s188 = sand.u32 %s29, 1
        %s189 = smul.addr %s188, 32
        %s190 = scalar_lea.vmem [#allocation2], %s189
        %p191 = pneg %p42
        %p192 = pneg %p39
        %p193 = pneg %p63
        %p194 = pneg %p60
        %p195 = pneg %p84
        %p196 = pneg %p81
        %p197 = pneg %p110
        %p198 = pneg %p107
        %s199 = sand.u32 %s97, 1
        %s200 = scalar_lea.sflag [#allocation4], %s199
        %s201 = sand.u32 %s97, 1
        %s202 = smul.addr %s201, 128
        %s203 = scalar_lea.vmem [#allocation7], %s202
        %s204 = smul.u32 8, %s21
        %s205 = smul.u32 8, %s21
        %v207 = vld [vmem:[%s177] sm:$0xf]
        %v208 = vld [vmem:[%s177 + $0x4] sm:$0xf]
        %v209 = vld [vmem:[%s177 + $0x8] sm:$0xf]
        %v210 = vld [vmem:[%s177 + $0xc] sm:$0xf]
        %v211 = vld [vmem:[%s177 + $0x10] sm:$0xf]
        %v212 = vld [vmem:[%s177 + $0x14] sm:$0xf]
        %v213 = vld [vmem:[%s177 + $0x18] sm:$0xf]
        %v214 = vld [vmem:[%s177 + $0x1c] sm:$0xf]
        %v215 = vld [vmem:[#allocation5] sm:$0xff]
        %v216 = vld [vmem:[#allocation5 + $0x8] sm:$0xff]
        %v217 = vld [vmem:[#allocation5 + $0x10] sm:$0xff]
        %v218 = vld [vmem:[#allocation5 + $0x18] sm:$0xff]
        %v219 = vld [vmem:[#allocation5 + $0x20] sm:$0xff]
        %v220 = vld [vmem:[#allocation5 + $0x28] sm:$0xff]
        %v221 = vld [vmem:[#allocation5 + $0x30] sm:$0xff]
        %v222 = vld [vmem:[#allocation5 + $0x38] sm:$0xff]
        %v223 = vld [vmem:[#allocation5 + $0x40] sm:$0xff]
        %v224 = vld [vmem:[#allocation5 + $0x48] sm:$0xff]
        %v225 = vld [vmem:[#allocation5 + $0x50] sm:$0xff]
        %v226 = vld [vmem:[#allocation5 + $0x58] sm:$0xff]
        %v227 = vld [vmem:[#allocation5 + $0x60] sm:$0xff]
        %v228 = vld [vmem:[#allocation5 + $0x68] sm:$0xff]
        %v229 = vld [vmem:[#allocation5 + $0x70] sm:$0xff]
        %v230 = vld [vmem:[#allocation5 + $0x78] sm:$0xff]
        %v231 = vld [vmem:[#allocation5 + $0x80] sm:$0xff]
        %v232 = vld [vmem:[#allocation5 + $0x88] sm:$0xff]
        %v233 = vld [vmem:[#allocation5 + $0x90] sm:$0xff]
        %v234 = vld [vmem:[#allocation5 + $0x98] sm:$0xff]
        %v235 = vld [vmem:[#allocation5 + $0xa0] sm:$0xff]
        %v236 = vld [vmem:[#allocation5 + $0xa8] sm:$0xff]
        %v237 = vld [vmem:[#allocation5 + $0xb0] sm:$0xff]
        %v238 = vld [vmem:[#allocation5 + $0xb8] sm:$0xff]
        %v239 = vld [vmem:[#allocation5 + $0xc0] sm:$0xff]
        %v240 = vld [vmem:[#allocation5 + $0xc8] sm:$0xff]
        %v241 = vld [vmem:[#allocation5 + $0xd0] sm:$0xff]
        %v242 = vld [vmem:[#allocation5 + $0xd8] sm:$0xff]
        %v243 = vld [vmem:[#allocation5 + $0xe0] sm:$0xff]
        %v244 = vld [vmem:[#allocation5 + $0xe8] sm:$0xff]
        %v245 = vld [vmem:[#allocation5 + $0xf0] sm:$0xff]
        %v246 = vld [vmem:[#allocation5 + $0xf8] sm:$0xff]
        %v247 = vld [vmem:[%s2] sm:$0xf]
        %v249 = vlaneseq
        %v250 = vshrl.u32 %v249, 7
        %v251 = vsub.s32 0, %v250
        %v252 = vrot.slane %v247, %v251
        %v253 = vlaneseq
        %v254 = vshrl.u32 %v253, 7
        %v255 = vsub.s32 1, %v254
        %v256 = vrot.slane %v247, %v255
        %v257 = vlaneseq
        %v258 = vshrl.u32 %v257, 7
        %v259 = vsub.s32 2, %v258
        %v260 = vrot.slane %v247, %v259
        %v261 = vlaneseq
        %v262 = vshrl.u32 %v261, 7
        %v263 = vsub.s32 3, %v262
        %v264 = vrot.slane %v247, %v263
        %v277 = vunpack.c.l.b16 %v207
        %v278 = vunpack.c.l.b16 %v208
        %v279 = vunpack.c.l.b16 %v209
        %v280 = vunpack.c.l.b16 %v210
        %v281 = vunpack.c.l.b16 %v211
        %v282 = vunpack.c.l.b16 %v212
        %v283 = vunpack.c.l.b16 %v213
        %v284 = vunpack.c.l.b16 %v214
        %v285 = vpack.c.b16 %v278, %v277
        %v286 = vpack.c.b16 %v280, %v279
        %v287 = vpack.c.b16 %v282, %v281
        %v288 = vpack.c.b16 %v284, %v283
        %v325 = vunpack.c.l.b16 %v215
        %v326 = vunpack.c.h.b16 %v215
        %v327 = vunpack.c.l.b16 %v216
        %v328 = vunpack.c.h.b16 %v216
        %v329 = vunpack.c.l.b16 %v217
        %v330 = vunpack.c.h.b16 %v217
        %v331 = vunpack.c.l.b16 %v218
        %v332 = vunpack.c.h.b16 %v218
        %v333 = vunpack.c.l.b16 %v219
        %v334 = vunpack.c.h.b16 %v219
        %v335 = vunpack.c.l.b16 %v220
        %v336 = vunpack.c.h.b16 %v220
        %v337 = vunpack.c.l.b16 %v221
        %v338 = vunpack.c.h.b16 %v221
        %v339 = vunpack.c.l.b16 %v222
        %v340 = vunpack.c.h.b16 %v222
        %v341 = vunpack.c.l.b16 %v223
        %v342 = vunpack.c.h.b16 %v223
        %v343 = vunpack.c.l.b16 %v224
        %v344 = vunpack.c.h.b16 %v224
        %v345 = vunpack.c.l.b16 %v225
        %v346 = vunpack.c.h.b16 %v225
        %v347 = vunpack.c.l.b16 %v226
        %v348 = vunpack.c.h.b16 %v226
        %v349 = vunpack.c.l.b16 %v227
        %v350 = vunpack.c.h.b16 %v227
        %v351 = vunpack.c.l.b16 %v228
        %v352 = vunpack.c.h.b16 %v228
        %v353 = vunpack.c.l.b16 %v229
        %v354 = vunpack.c.h.b16 %v229
        %v355 = vunpack.c.l.b16 %v230
        %v356 = vunpack.c.h.b16 %v230
        %v357 = vunpack.c.l.b16 %v231
        %v358 = vunpack.c.h.b16 %v231
        %v359 = vunpack.c.l.b16 %v232
        %v360 = vunpack.c.h.b16 %v232
        %v361 = vunpack.c.l.b16 %v233
        %v362 = vunpack.c.h.b16 %v233
        %v363 = vunpack.c.l.b16 %v234
        %v364 = vunpack.c.h.b16 %v234
        %v365 = vunpack.c.l.b16 %v235
        %v366 = vunpack.c.h.b16 %v235
        %v367 = vunpack.c.l.b16 %v236
        %v368 = vunpack.c.h.b16 %v236
        %v369 = vunpack.c.l.b16 %v237
        %v370 = vunpack.c.h.b16 %v237
        %v371 = vunpack.c.l.b16 %v238
        %v372 = vunpack.c.h.b16 %v238
        %v373 = vunpack.c.l.b16 %v239
        %v374 = vunpack.c.h.b16 %v239
        %v375 = vunpack.c.l.b16 %v240
        %v376 = vunpack.c.h.b16 %v240
        %v377 = vunpack.c.l.b16 %v241
        %v378 = vunpack.c.h.b16 %v241
        %v379 = vunpack.c.l.b16 %v242
        %v380 = vunpack.c.h.b16 %v242
        %v381 = vunpack.c.l.b16 %v243
        %v382 = vunpack.c.h.b16 %v243
        %v383 = vunpack.c.l.b16 %v244
        %v384 = vunpack.c.h.b16 %v244
        %v385 = vunpack.c.l.b16 %v245
        %v386 = vunpack.c.h.b16 %v245
        %v387 = vunpack.c.l.b16 %v246
        %v388 = vunpack.c.h.b16 %v246
        %v389 = vpack.c.b16 %v329, %v325
        %v390 = vpack.c.b16 %v330, %v326
        %v391 = vpack.c.b16 %v331, %v327
        %v392 = vpack.c.b16 %v332, %v328
        %v393 = vpack.c.b16 %v337, %v333
        %v394 = vpack.c.b16 %v338, %v334
        %v395 = vpack.c.b16 %v339, %v335
        %v396 = vpack.c.b16 %v340, %v336
        %v397 = vpack.c.b16 %v345, %v341
        %v398 = vpack.c.b16 %v346, %v342
        %v399 = vpack.c.b16 %v347, %v343
        %v400 = vpack.c.b16 %v348, %v344
        %v401 = vpack.c.b16 %v353, %v349
        %v402 = vpack.c.b16 %v354, %v350
        %v403 = vpack.c.b16 %v355, %v351
        %v404 = vpack.c.b16 %v356, %v352
        %v405 = vpack.c.b16 %v361, %v357
        %v406 = vpack.c.b16 %v362, %v358
        %v407 = vpack.c.b16 %v363, %v359
        %v408 = vpack.c.b16 %v364, %v360
        %v409 = vpack.c.b16 %v369, %v365
        %v410 = vpack.c.b16 %v370, %v366
        %v411 = vpack.c.b16 %v371, %v367
        %v412 = vpack.c.b16 %v372, %v368
        %v413 = vpack.c.b16 %v377, %v373
        %v414 = vpack.c.b16 %v378, %v374
        %v415 = vpack.c.b16 %v379, %v375
        %v416 = vpack.c.b16 %v380, %v376
        %v417 = vpack.c.b16 %v385, %v381
        %v418 = vpack.c.b16 %v386, %v382
        %v419 = vpack.c.b16 %v387, %v383
        %v420 = vpack.c.b16 %v388, %v384
        %453 = vmatprep.subr.bf16.mxu0 %v390
        %454 = vmatpush1.bf16.msra.mxu0 %v389
        %455 = vmatprep.subr.bf16.mxu0 %v394
        %456 = vmatpush1.bf16.msra.mxu0 %v393
        %457 = vmatprep.subr.bf16.mxu0 %v398
        %458 = vmatpush1.bf16.msra.mxu0 %v397
        %459 = vmatprep.subr.bf16.mxu0 %v402
        %460 = vmatpush1.bf16.msra.mxu0 %v401
        %461 = vmatprep.subr.bf16.mxu0 %v406
        %462 = vmatpush1.bf16.msra.mxu0 %v405
        %463 = vmatprep.subr.bf16.mxu0 %v410
        %464 = vmatpush1.bf16.msra.mxu0 %v409
        %465 = vmatprep.subr.bf16.mxu0 %v414
        %466 = vmatpush1.bf16.msra.mxu0 %v413
        %467 = vmatprep.subr.bf16.mxu0 %v418
        %468 = vmatpush1.bf16.msra.mxu0 %v417
        %469 = vmatprep.subr.bf16.mxu0 0
        %470 = vmatpush1.bf16.msra.mxu0 0
        %471 = vmatprep.subr.bf16.mxu0 0
        %472 = vmatpush1.bf16.msra.mxu0 0
        %473 = vmatprep.subr.bf16.mxu0 0
        %474 = vmatpush1.bf16.msra.mxu0 0
        %475 = vmatprep.subr.bf16.mxu0 0
        %476 = vmatpush1.bf16.msra.mxu0 0
        %477 = vmatprep.subr.bf16.mxu0 0
        %478 = vmatpush1.bf16.msra.mxu0 0
        %479 = vmatprep.subr.bf16.mxu0 0
        %480 = vmatpush1.bf16.msra.mxu0 0
        %481 = vmatprep.subr.bf16.mxu0 0
        %482 = vmatpush1.bf16.msra.mxu0 0
        %483 = vmatprep.subr.bf16.mxu0 0
        %484 = vmatpush1.bf16.msra.mxu0 0
        %485 = vmatprep.mubr.bf16.mxu0 0
        %486 = vmatmul.mubr.bf16.gmra.mrb[0].mxu0 %v285
        %v487 = vpop.f32.mrb[0].mxu0
        %v488 = vadd.f32 %v252, %v487
        %v489 = vpop.f32.mrb[0].mxu0
        %v490 = vadd.f32 %v256, %v489
        %v491 = vpop.f32.mrb[0].mxu0
        %v492 = vadd.f32 %v252, %v491
        %v493 = vpop.f32.mrb[0].mxu0
        %v494 = vadd.f32 %v256, %v493
        %495 = vmatprep.mubr.bf16.mxu0 0
        %496 = vmatmul.mubr.bf16.gmra.mrb[0].mxu0 %v286
        %v497 = vpop.f32.mrb[0].mxu0
        %v498 = vadd.f32 %v252, %v497
        %v499 = vpop.f32.mrb[0].mxu0
        %v500 = vadd.f32 %v256, %v499
        %v501 = vpop.f32.mrb[0].mxu0
        %v502 = vadd.f32 %v252, %v501
        %v503 = vpop.f32.mrb[0].mxu0
        %v504 = vadd.f32 %v256, %v503
        %505 = vmatprep.mubr.bf16.mxu0 0
        %506 = vmatmul.mubr.bf16.gmra.mrb[0].mxu0 %v287
        %v507 = vpop.f32.mrb[0].mxu0
        %v508 = vadd.f32 %v252, %v507
        %v509 = vpop.f32.mrb[0].mxu0
        %v510 = vadd.f32 %v256, %v509
        %v511 = vpop.f32.mrb[0].mxu0
        %v512 = vadd.f32 %v252, %v511
        %v513 = vpop.f32.mrb[0].mxu0
        %v514 = vadd.f32 %v256, %v513
        %515 = vmatprep.mubr.bf16.mxu0 0
        %516 = vmatmul.mubr.bf16.gmra.mrb[0].mxu0 %v288
        %v517 = vpop.f32.mrb[0].mxu0
        %v518 = vadd.f32 %v252, %v517
        %v519 = vpop.f32.mrb[0].mxu0
        %v520 = vadd.f32 %v256, %v519
        %v521 = vpop.f32.mrb[0].mxu0
        %v522 = vadd.f32 %v252, %v521
        %v523 = vpop.f32.mrb[0].mxu0
        %v524 = vadd.f32 %v256, %v523
        %525 = vdwg.mxu0
        %526 = vmatprep.subr.bf16.mxu0 %v392
        %527 = vmatpush1.bf16.msra.mxu0 %v391
        %528 = vmatprep.subr.bf16.mxu0 %v396
        %529 = vmatpush1.bf16.msra.mxu0 %v395
        %530 = vmatprep.subr.bf16.mxu0 %v400
        %531 = vmatpush1.bf16.msra.mxu0 %v399
        %532 = vmatprep.subr.bf16.mxu0 %v404
        %533 = vmatpush1.bf16.msra.mxu0 %v403
        %534 = vmatprep.subr.bf16.mxu0 %v408
        %535 = vmatpush1.bf16.msra.mxu0 %v407
        %536 = vmatprep.subr.bf16.mxu0 %v412
        %537 = vmatpush1.bf16.msra.mxu0 %v411
        %538 = vmatprep.subr.bf16.mxu0 %v416
        %539 = vmatpush1.bf16.msra.mxu0 %v415
        %540 = vmatprep.subr.bf16.mxu0 %v420
        %541 = vmatpush1.bf16.msra.mxu0 %v419
        %542 = vmatprep.subr.bf16.mxu0 0
        %543 = vmatpush1.bf16.msra.mxu0 0
        %544 = vmatprep.subr.bf16.mxu0 0
        %545 = vmatpush1.bf16.msra.mxu0 0
        %546 = vmatprep.subr.bf16.mxu0 0
        %547 = vmatpush1.bf16.msra.mxu0 0
        %548 = vmatprep.subr.bf16.mxu0 0
        %549 = vmatpush1.bf16.msra.mxu0 0
        %550 = vmatprep.subr.bf16.mxu0 0
        %551 = vmatpush1.bf16.msra.mxu0 0
        %552 = vmatprep.subr.bf16.mxu0 0
        %553 = vmatpush1.bf16.msra.mxu0 0
        %554 = vmatprep.subr.bf16.mxu0 0
        %555 = vmatpush1.bf16.msra.mxu0 0
        %556 = vmatprep.subr.bf16.mxu0 0
        %557 = vmatpush1.bf16.msra.mxu0 0
        %558 = vmatprep.mubr.bf16.mxu0 0
        %559 = vmatmul.mubr.bf16.gmra.mrb[0].mxu0 %v285
        %v560 = vpop.f32.mrb[0].mxu0
        %v561 = vadd.f32 %v260, %v560
        %v562 = vpop.f32.mrb[0].mxu0
        %v563 = vadd.f32 %v264, %v562
        %v564 = vpop.f32.mrb[0].mxu0
        %v565 = vadd.f32 %v260, %v564
        %v566 = vpop.f32.mrb[0].mxu0
        %v567 = vadd.f32 %v264, %v566
        %568 = vmatprep.mubr.bf16.mxu0 0
        %569 = vmatmul.mubr.bf16.gmra.mrb[0].mxu0 %v286
        %v570 = vpop.f32.mrb[0].mxu0
        %v571 = vadd.f32 %v260, %v570
        %v572 = vpop.f32.mrb[0].mxu0
        %v573 = vadd.f32 %v264, %v572
        %v574 = vpop.f32.mrb[0].mxu0
        %v575 = vadd.f32 %v260, %v574
        %v576 = vpop.f32.mrb[0].mxu0
        %v577 = vadd.f32 %v264, %v576
        %578 = vmatprep.mubr.bf16.mxu0 0
        %579 = vmatmul.mubr.bf16.gmra.mrb[0].mxu0 %v287
        %v580 = vpop.f32.mrb[0].mxu0
        %v581 = vadd.f32 %v260, %v580
        %v582 = vpop.f32.mrb[0].mxu0
        %v583 = vadd.f32 %v264, %v582
        %v584 = vpop.f32.mrb[0].mxu0
        %v585 = vadd.f32 %v260, %v584
        %v586 = vpop.f32.mrb[0].mxu0
        %v587 = vadd.f32 %v264, %v586
        %588 = vmatprep.mubr.bf16.mxu0 0
        %589 = vmatmul.mubr.bf16.gmra.mrb[0].mxu0 %v288
        %v590 = vpop.f32.mrb[0].mxu0
        %v591 = vadd.f32 %v260, %v590
        %v592 = vpop.f32.mrb[0].mxu0
        %v593 = vadd.f32 %v264, %v592
        %v594 = vpop.f32.mrb[0].mxu0
        %v595 = vadd.f32 %v260, %v594
        %v596 = vpop.f32.mrb[0].mxu0
        %v597 = vadd.f32 %v264, %v596
        %598 = vdwg.mxu0
        %v599 = vpack.c.bf16 %v488, %v488
        %v600 = vpack.c.bf16 %v490, %v490
        %v601 = vpack.c.bf16 %v561, %v561
        %v602 = vpack.c.bf16 %v563, %v563
        %v603 = vpack.c.bf16 %v492, %v492
        %v604 = vpack.c.bf16 %v494, %v494
        %v605 = vpack.c.bf16 %v565, %v565
        %v606 = vpack.c.bf16 %v567, %v567
        %v607 = vpack.c.bf16 %v498, %v498
        %v608 = vpack.c.bf16 %v500, %v500
        %v609 = vpack.c.bf16 %v571, %v571
        %v610 = vpack.c.bf16 %v573, %v573
        %v611 = vpack.c.bf16 %v502, %v502
        %v612 = vpack.c.bf16 %v504, %v504
        %v613 = vpack.c.bf16 %v575, %v575
        %v614 = vpack.c.bf16 %v577, %v577
        %v615 = vpack.c.bf16 %v508, %v508
        %v616 = vpack.c.bf16 %v510, %v510
        %v617 = vpack.c.bf16 %v581, %v581
        %v618 = vpack.c.bf16 %v583, %v583
        %v619 = vpack.c.bf16 %v512, %v512
        %v620 = vpack.c.bf16 %v514, %v514
        %v621 = vpack.c.bf16 %v585, %v585
        %v622 = vpack.c.bf16 %v587, %v587
        %v623 = vpack.c.bf16 %v518, %v518
        %v624 = vpack.c.bf16 %v520, %v520
        %v625 = vpack.c.bf16 %v591, %v591
        %v626 = vpack.c.bf16 %v593, %v593
        %v627 = vpack.c.bf16 %v522, %v522
        %v628 = vpack.c.bf16 %v524, %v524
        %v629 = vpack.c.bf16 %v595, %v595
        %v630 = vpack.c.bf16 %v597, %v597
        %v663 = vunpack.c.l.b16 %v599
        %v664 = vunpack.c.l.b16 %v600
        %v665 = vunpack.c.l.b16 %v601
        %v666 = vunpack.c.l.b16 %v602
        %v667 = vunpack.c.l.b16 %v603
        %v668 = vunpack.c.l.b16 %v604
        %v669 = vunpack.c.l.b16 %v605
        %v670 = vunpack.c.l.b16 %v606
        %v671 = vunpack.c.l.b16 %v607
        %v672 = vunpack.c.l.b16 %v608
        %v673 = vunpack.c.l.b16 %v609
        %v674 = vunpack.c.l.b16 %v610
        %v675 = vunpack.c.l.b16 %v611
        %v676 = vunpack.c.l.b16 %v612
        %v677 = vunpack.c.l.b16 %v613
        %v678 = vunpack.c.l.b16 %v614
        %v679 = vunpack.c.l.b16 %v615
        %v680 = vunpack.c.l.b16 %v616
        %v681 = vunpack.c.l.b16 %v617
        %v682 = vunpack.c.l.b16 %v618
        %v683 = vunpack.c.l.b16 %v619
        %v684 = vunpack.c.l.b16 %v620
        %v685 = vunpack.c.l.b16 %v621
        %v686 = vunpack.c.l.b16 %v622
        %v687 = vunpack.c.l.b16 %v623
        %v688 = vunpack.c.l.b16 %v624
        %v689 = vunpack.c.l.b16 %v625
        %v690 = vunpack.c.l.b16 %v626
        %v691 = vunpack.c.l.b16 %v627
        %v692 = vunpack.c.l.b16 %v628
        %v693 = vunpack.c.l.b16 %v629
        %v694 = vunpack.c.l.b16 %v630
        %v695 = vpack.c.b16 %v664, %v663
        %v696 = vpack.c.b16 %v666, %v665
        %v697 = vpack.c.b16 %v668, %v667
        %v698 = vpack.c.b16 %v670, %v669
        %v699 = vpack.c.b16 %v672, %v671
        %v700 = vpack.c.b16 %v674, %v673
        %v701 = vpack.c.b16 %v676, %v675
        %v702 = vpack.c.b16 %v678, %v677
        %v703 = vpack.c.b16 %v680, %v679
        %v704 = vpack.c.b16 %v682, %v681
        %v705 = vpack.c.b16 %v684, %v683
        %v706 = vpack.c.b16 %v686, %v685
        %v707 = vpack.c.b16 %v688, %v687
        %v708 = vpack.c.b16 %v690, %v689
        %v709 = vpack.c.b16 %v692, %v691
        %v710 = vpack.c.b16 %v694, %v693
        %727 = vst [vmem:[%s203] sm:$0xff] %v695
        %728 = vst [vmem:[%s203 + $0x8] sm:$0xff] %v696
        %729 = vst [vmem:[%s203 + $0x10] sm:$0xff] %v697
        %730 = vst [vmem:[%s203 + $0x18] sm:$0xff] %v698
        %731 = vst [vmem:[%s203 + $0x20] sm:$0xff] %v699
        %732 = vst [vmem:[%s203 + $0x28] sm:$0xff] %v700
        %733 = vst [vmem:[%s203 + $0x30] sm:$0xff] %v701
        %734 = vst [vmem:[%s203 + $0x38] sm:$0xff] %v702
        %735 = vst [vmem:[%s203 + $0x40] sm:$0xff] %v703
        %736 = vst [vmem:[%s203 + $0x48] sm:$0xff] %v704
        %737 = vst [vmem:[%s203 + $0x50] sm:$0xff] %v705
        %738 = vst [vmem:[%s203 + $0x58] sm:$0xff] %v706
        %739 = vst [vmem:[%s203 + $0x60] sm:$0xff] %v707
        %740 = vst [vmem:[%s203 + $0x68] sm:$0xff] %v708
        %741 = vst [vmem:[%s203 + $0x70] sm:$0xff] %v709
        %742 = vst [vmem:[%s203 + $0x78] sm:$0xff] %v710
        %s743 = sand.u32 %s97, 1
        %s744 = scalar_lea.sflag [#allocation4], %s743
        %s745 = sand.u32 %s97, 1
        %s746 = smul.addr %s745, 128
        %s747 = scalar_lea.vmem [#allocation7], %s746
        // Predicated region
        $region41: #{tpu_custom_call.1} parent=31 // pred_check
          %p748 = pneg %p107
        $region42: #{tpu_custom_call.1} parent=31 // pred_check_branch
          %750 = sbr.rel (%p748) target = $region44
        $region43: #{tpu_custom_call.1} parent=31 // pred_region
          %s751 = smul.u32 8, %s21
          %s753 = ssub.s32 2048, 2048
          %754 = vsyncadd %s744, %s753
          %s755 = smul.addr %s751, 4
          %s756 = smul.addr %s755, 64
          %s757 = scalar_lea.hbm %s3, %s756
          %s758 = sshll.u32 %s747, 4
          %s759 = int_to_ptr.vmem [resolvable:$true] %s758
          %764 = dma.vmem_to_hbm [thread:$0]  %s759, 2048, %s757, %s744, 256, 256, 16
        $region44: #{tpu_custom_call.1} parent=31 // pred_fallthru
          _
      $region32: #{tpu_custom_call.1} parent=5 // pred_fallthru
        _
      %p765 = scmp.le.s32.totalorder 2, %s16
      // Predicated region
      $region45: #{tpu_custom_call.1} parent=5 // pred_check
        %p766 = pneg %p765
      $region46: #{tpu_custom_call.1} parent=5 // pred_check_branch
        %768 = sbr.rel (%p766) target = $region48
      $region47: #{tpu_custom_call.1} parent=5 // pred_region
        %s769 = ssub.s32 %s16, 2
        // Predicated region
        $region49: #{tpu_custom_call.1} parent=47 // pred_check
          %p770 = pneg %p113
        $region50: #{tpu_custom_call.1} parent=47 // pred_check_branch
          %772 = sbr.rel (%p770) target = $region52
        $region51: #{tpu_custom_call.1} parent=47 // pred_region
          %s773 = sand.u32 %s98, 1
          %s774 = scalar_lea.sflag [#allocation4], %s773
          %s775 = sand.u32 %s98, 1
          %s776 = smul.addr %s775, 128
          %s777 = scalar_lea.vmem [#allocation7], %s776
          %778 = dma.done %s774, 2048
        $region52: #{tpu_custom_call.1} parent=47 // pred_fallthru
          _
      $region48: #{tpu_custom_call.1} parent=5 // pred_fallthru
        _
    $region6: #{tpu_custom_call.1} parent=1 // loop_footer
      %s20 = sadd.s32 1, %s16
    $region7: #{tpu_custom_call.1} parent=1 // loop_footer_branch
      %15 = sbr.rel target = $region3
    $region8: #{tpu_custom_call.1} parent=1 // loop_exit
      _
    %779 = vsyncpa [#allocation3], 1
    %s780 = scalar_lea.sflag [#allocation3], 1
    %781 = vsyncpa %s780, 1
    %782 = vsyncpa [#allocation6], 1
    %783 = vsyncpa [#allocation4], 1
    %s784 = scalar_lea.sflag [#allocation4], 1
    %785 = vsyncpa %s784, 1

</llo_original>
